<compile_context>
chip_gen: v6e
topology: v6e:2x2x1
jax: 0.10.0
libtpu: 0.0.40
codegen_flags: <defaults>
</compile_context>

<pallas_src>
import math

import jax
import jax.numpy as jnp
from jax import lax
from jax.experimental import pallas as pl
from jax.experimental.pallas import tpu as pltpu


# ---------------------------------------------------------------------------
# Model dimensions (small, consistent with BertConfig semantics)
# ---------------------------------------------------------------------------
B = 2          # batch
S = 8          # sequence length
H = 32         # hidden size
NH = 4         # num attention heads
DH = H // NH   # attention head size
I = 64         # intermediate size
LN_EPS = 1e-12
NEG = -1e9     # additive "-inf" for cross-batch score entries


def _gelu(x):
    # gelu(x) = x * 0.5 * (1 + erf(x / sqrt(2)))  -- exact, matches torch.erf form
    return x * 0.5 * (1.0 + lax.erf(x / math.sqrt(2.0)))


def _layernorm(x, w, b, eps):
    # TF-style layernorm (epsilon inside the sqrt), matching BertLayerNorm
    u = jnp.mean(x, axis=-1, keepdims=True)
    s = jnp.mean((x - u) ** 2, axis=-1, keepdims=True)
    xn = (x - u) / jnp.sqrt(s + eps)
    return w * xn + b


# ---------------------------------------------------------------------------
# Pallas kernel: whole layer in a single grid step over the flattened slab
# ---------------------------------------------------------------------------
def bert_layer_kernel(x_ref, mask_ref, cross_ref, hsel_ref,
                      wqkv_ref, bqkv_ref, wo_ref, bo_ref,
                      ln1w_ref, ln1b_ref,
                      wi_ref, bi_ref, wd_ref, bd_ref,
                      ln2w_ref, ln2b_ref,
                      out_ref):
    x = x_ref[...]                              # (B*S, H)

    # ---- fused QKV projection (Q pre-scaled by 1/sqrt(DH) in the weights) ----
    qkv = jnp.dot(x, wqkv_ref[...],
                  preferred_element_type=jnp.float32) + bqkv_ref[...]   # (B*S, 3H)
    q = qkv[:, 0:H]                             # (B*S, H)  zero lane offset
    k = qkv[:, H:2 * H]                         # (B*S, H)  32-lane-aligned chunk
    v = qkv[:, 2 * H:3 * H]                     # (B*S, H)  32-lane-aligned chunk

    hsel = hsel_ref[...]                        # (B*NH*S, H) 0/1 head selector

    # ---- block-diagonal Q: replicate each batch's rows NH times on the
    #      sublane axis ((b, h, s) row order), zero lanes outside head h ----
    q_rep = jnp.concatenate(
        [q[b * S:(b + 1) * S] for b in range(B) for _ in range(NH)], axis=0)
    q_bd = q_rep * hsel                         # (B*NH*S, H)

    # ---- ONE scores matmul (contract over H; only head h's lanes are nonzero
    #      in each row of q_bd, so this computes per-head Q.K^T).  Mosaic
    #      transposes k exactly once. ----
    scores = lax.dot_general(q_bd, k, (((1,), (1,)), ((), ())),
                             preferred_element_type=jnp.float32)        # (B*NH*S, B*S)
    # user attention mask (per key column) + cross-batch -inf block mask
    scores = scores + mask_ref[...] + cross_ref[...]

    # ---- numerically-stable softmax, exact divide ----
    m = jnp.max(scores, axis=-1, keepdims=True)
    e = jnp.exp(scores - m)
    denom = jnp.sum(e, axis=-1, keepdims=True)
    probs = e / denom
    # dropout(attention_probs) -> identity in eval mode

    # ---- ONE probs @ V matmul (cross-batch probs underflow to exactly 0) ----
    ctx_full = jnp.dot(probs, v, preferred_element_type=jnp.float32)    # (B*NH*S, H)
    ctx_full = ctx_full * hsel                  # keep only the row's own head lanes

    # ---- collapse per-head sublane replicas back to (B*S, H) ----
    parts = []
    for b in range(B):
        acc = ctx_full[(b * NH) * S:(b * NH) * S + S]
        for h in range(1, NH):
            r0 = (b * NH + h) * S
            acc = acc + ctx_full[r0:r0 + S]
        parts.append(acc)
    ctx = jnp.concatenate(parts, axis=0)        # (B*S, H)

    # ---- BertSelfOutput: single output projection + residual + LayerNorm ----
    attn = jnp.dot(ctx, wo_ref[...],
                   preferred_element_type=jnp.float32) + bo_ref[...]    # (B*S, H)
    h1 = _layernorm(attn + x, ln1w_ref[...], ln1b_ref[...], LN_EPS)

    # ---- BertIntermediate: dense + gelu ----
    inter = jnp.dot(h1, wi_ref[...], preferred_element_type=jnp.float32) + bi_ref[...]
    inter = _gelu(inter)

    # ---- BertOutput: dense + residual + LayerNorm ----
    ffn = jnp.dot(inter, wd_ref[...], preferred_element_type=jnp.float32) + bd_ref[...]
    out = _layernorm(ffn + h1, ln2w_ref[...], ln2b_ref[...], LN_EPS)

    out_ref[...] = out.astype(out_ref.dtype)


# ---------------------------------------------------------------------------
# One-time parameter prep: fuse QKV, fold the attention scale into Q, and
# precompute the constant block-structure masks used by the kernel.
# ---------------------------------------------------------------------------
def fuse_params(p):
    scale = 1.0 / math.sqrt(DH)
    fused = {
        "wqkv": jnp.concatenate([p["wq"] * scale, p["wk"], p["wv"]], axis=1),  # (H, 3H)
        "bqkv": jnp.concatenate([p["bq"] * scale, p["bk"], p["bv"]], axis=1),  # (1, 3H)
        "wo": p["wo"], "bo": p["bo"],
        "ln1_w": p["ln1_w"], "ln1_b": p["ln1_b"],
        "wi": p["wi"], "bi": p["bi"],
        "wd": p["wd"], "bd": p["bd"],
        "ln2_w": p["ln2_w"], "ln2_b": p["ln2_b"],
    }
    # row r = (b*NH + h)*S + s  of the block-diagonal attention layout
    rows = jnp.arange(B * NH * S)
    row_h = (rows // S) % NH                    # head id of each row
    row_b = rows // (NH * S)                    # batch id of each row
    col_b = jnp.arange(B * S) // S              # batch id of each score column
    lane_h = jnp.arange(H) // DH                # head id of each hidden lane
    # 0/1 selector: row of head h keeps lanes [h*DH, (h+1)*DH)
    fused["head_sel"] = (row_h[:, None] == lane_h[None, :]).astype(jnp.float32)   # (B*NH*S, H)
    # additive block mask: 0 for same-batch score entries, -1e9 for cross-batch
    fused["cross_mask"] = jnp.where(row_b[:, None] == col_b[None, :],
                                    0.0, NEG).astype(jnp.float32)                 # (B*NH*S, B*S)
    return fused


def bert_layer_pallas(x, mask, fused):
    """x: (B,S,H) f32, mask: (B,1,S) additive f32, fused: dict from fuse_params."""
    x_flat = x.reshape(B * S, H)                # wrapper-side layout plumbing (free)
    mask_flat = mask.reshape(1, B * S)          # column b'*S + k carries mask[b',0,k]

    args = (
        x_flat, mask_flat, fused["cross_mask"], fused["head_sel"],
        fused["wqkv"], fused["bqkv"], fused["wo"], fused["bo"],
        fused["ln1_w"], fused["ln1_b"],
        fused["wi"], fused["bi"], fused["wd"], fused["bd"],
        fused["ln2_w"], fused["ln2_b"],
    )

    def full_spec(a):
        return pl.BlockSpec(a.shape, lambda i: (0,) * a.ndim)

    out_flat = pl.pallas_call(
        bert_layer_kernel,
        out_shape=jax.ShapeDtypeStruct((B * S, H), jnp.float32),
        grid=(1,),
        in_specs=[full_spec(a) for a in args],
        out_specs=pl.BlockSpec((B * S, H), lambda i: (0, 0)),
        compiler_params=pltpu.CompilerParams(
            dimension_semantics=("arbitrary",)),
    )(*args)

    return out_flat.reshape(B, S, H)


# ---------------------------------------------------------------------------
# Pure-JAX reference (mirrors the PyTorch module, eval mode)
# ---------------------------------------------------------------------------
def bert_layer_ref(x, mask, p):
    def lin(a, w, b):
        return a @ w + b
    q = lin(x, p["wq"], p["bq"])
    k = lin(x, p["wk"], p["bk"])
    v = lin(x, p["wv"], p["bv"])
    def split(a):  # (B,S,H) -> (B,NH,S,DH)
        return a.reshape(B, S, NH, DH).transpose(0, 2, 1, 3)
    qh, kh, vh = split(q), split(k), split(v)
    scores = jnp.einsum("bhqd,bhkd->bhqk", qh, kh) / math.sqrt(DH)
    scores = scores + mask[:, None, :, :]          # (B,1,1,S) broadcast
    probs = jax.nn.softmax(scores, axis=-1)
    ctx = jnp.einsum("bhqk,bhkd->bhqd", probs, vh)
    ctx = ctx.transpose(0, 2, 1, 3).reshape(B, S, H)
    attn = lin(ctx, p["wo"], p["bo"])
    h1 = _layernorm(attn + x, p["ln1_w"], p["ln1_b"], LN_EPS)
    inter = _gelu(lin(h1, p["wi"], p["bi"]))
    ffn = lin(inter, p["wd"], p["bd"])
    return _layernorm(ffn + h1, p["ln2_w"], p["ln2_b"], LN_EPS)


# ---------------------------------------------------------------------------
# Deterministic parameter init (weights stored as (in, out): y = x @ W + b)
# ---------------------------------------------------------------------------
def make_params(key):
    keys = jax.random.split(key, 8)
    std = 0.02
    p = {
        "wq": jax.random.normal(keys[0], (H, H), jnp.float32) * std,
        "wk": jax.random.normal(keys[1], (H, H), jnp.float32) * std,
        "wv": jax.random.normal(keys[2], (H, H), jnp.float32) * std,
        "wo": jax.random.normal(keys[3], (H, H), jnp.float32) * std,
        "wi": jax.random.normal(keys[4], (H, I), jnp.float32) * std,
        "wd": jax.random.normal(keys[5], (I, H), jnp.float32) * std,
        "bq": jax.random.normal(keys[6], (1, H), jnp.float32) * std,
        "bk": jnp.zeros((1, H), jnp.float32),
        "bv": jnp.full((1, H), 0.01, jnp.float32),
        "bo": jnp.zeros((1, H), jnp.float32),
        "bi": jax.random.normal(keys[7], (1, I), jnp.float32) * std,
        "bd": jnp.zeros((1, H), jnp.float32),
        "ln1_w": jnp.ones((1, H), jnp.float32),
        "ln1_b": jnp.zeros((1, H), jnp.float32),
        "ln2_w": jnp.ones((1, H), jnp.float32),
        "ln2_b": jnp.zeros((1, H), jnp.float32),
    }
    return p


if __name__ == "__main__":
    key = jax.random.PRNGKey(0)
    k_x, k_m, k_p = jax.random.split(key, 3)

    x = jax.random.normal(k_x, (B, S, H), jnp.float32)
    # additive attention mask: 0 for attend, -10000 for masked (BERT-style)
    keep = (jax.random.uniform(k_m, (B, 1, S)) > 0.2).astype(jnp.float32)
    mask = (1.0 - keep) * -10000.0

    params = make_params(k_p)
    fused = fuse_params(params)   # one-time param prep (QKV fusion + scale fold + masks)

    out = bert_layer_pallas(x, mask, fused)
    out = jax.block_until_ready(out)

    ref = bert_layer_ref(x, mask, params)
    assert out.shape == (B, S, H)
    assert jnp.allclose(out, ref, atol=1e-4, rtol=1e-4), "mismatch vs JAX reference"

    print("KERNEL_OK")
</pallas_src>

<mosaic_0001>
module attributes {stable_mosaic.version = 11 : i64} {
  func.func @bert_layer_kernel(%arg0: i32, %arg1: memref<16x32xf32, #tpu.memory_space<vmem>>, %arg2: memref<1x16xf32, #tpu.memory_space<vmem>>, %arg3: memref<64x16xf32, #tpu.memory_space<vmem>>, %arg4: memref<64x32xf32, #tpu.memory_space<vmem>>, %arg5: memref<32x96xf32, #tpu.memory_space<vmem>>, %arg6: memref<1x96xf32, #tpu.memory_space<vmem>>, %arg7: memref<32x32xf32, #tpu.memory_space<vmem>>, %arg8: memref<1x32xf32, #tpu.memory_space<vmem>>, %arg9: memref<1x32xf32, #tpu.memory_space<vmem>>, %arg10: memref<1x32xf32, #tpu.memory_space<vmem>>, %arg11: memref<32x64xf32, #tpu.memory_space<vmem>>, %arg12: memref<1x64xf32, #tpu.memory_space<vmem>>, %arg13: memref<64x32xf32, #tpu.memory_space<vmem>>, %arg14: memref<1x32xf32, #tpu.memory_space<vmem>>, %arg15: memref<1x32xf32, #tpu.memory_space<vmem>>, %arg16: memref<1x32xf32, #tpu.memory_space<vmem>>, %arg17: memref<16x32xf32, #tpu.memory_space<vmem>>) attributes {dimension_semantics = [#tpu.dimension_semantics<arbitrary>], iteration_bounds = array<i64: 1>, scalar_prefetch = 0 : i64, scratch_operands = 0 : i64, tpu.core_type = #tpu.core_type<tc>, window_params = [{pipeline_mode = #tpu.pipeline_mode<synchronous>, transform_indices = @transform_0, window_bounds = array<i64: 16, 32>}, {pipeline_mode = #tpu.pipeline_mode<synchronous>, transform_indices = @transform_1, window_bounds = array<i64: 1, 16>}, {pipeline_mode = #tpu.pipeline_mode<synchronous>, transform_indices = @transform_2, window_bounds = array<i64: 64, 16>}, {pipeline_mode = #tpu.pipeline_mode<synchronous>, transform_indices = @transform_3, window_bounds = array<i64: 64, 32>}, {pipeline_mode = #tpu.pipeline_mode<synchronous>, transform_indices = @transform_4, window_bounds = array<i64: 32, 96>}, {pipeline_mode = #tpu.pipeline_mode<synchronous>, transform_indices = @transform_5, window_bounds = array<i64: 1, 96>}, {pipeline_mode = #tpu.pipeline_mode<synchronous>, transform_indices = @transform_6, window_bounds = array<i64: 32, 32>}, {pipeline_mode = #tpu.pipeline_mode<synchronous>, transform_indices = @transform_7, window_bounds = array<i64: 1, 32>}, {pipeline_mode = #tpu.pipeline_mode<synchronous>, transform_indices = @transform_8, window_bounds = array<i64: 1, 32>}, {pipeline_mode = #tpu.pipeline_mode<synchronous>, transform_indices = @transform_9, window_bounds = array<i64: 1, 32>}, {pipeline_mode = #tpu.pipeline_mode<synchronous>, transform_indices = @transform_10, window_bounds = array<i64: 32, 64>}, {pipeline_mode = #tpu.pipeline_mode<synchronous>, transform_indices = @transform_11, window_bounds = array<i64: 1, 64>}, {pipeline_mode = #tpu.pipeline_mode<synchronous>, transform_indices = @transform_12, window_bounds = array<i64: 64, 32>}, {pipeline_mode = #tpu.pipeline_mode<synchronous>, transform_indices = @transform_13, window_bounds = array<i64: 1, 32>}, {pipeline_mode = #tpu.pipeline_mode<synchronous>, transform_indices = @transform_14, window_bounds = array<i64: 1, 32>}, {pipeline_mode = #tpu.pipeline_mode<synchronous>, transform_indices = @transform_15, window_bounds = array<i64: 1, 32>}, {pipeline_mode = #tpu.pipeline_mode<synchronous>, transform_indices = @transform_16, window_bounds = array<i64: 16, 32>}]} {
    %c0 = arith.constant 0 : index
    %c0_0 = arith.constant 0 : index
    %0 = vector.load %arg1[%c0, %c0_0] : memref<16x32xf32, #tpu.memory_space<vmem>>, vector<16x32xf32>
    %c0_1 = arith.constant 0 : index
    %c0_2 = arith.constant 0 : index
    %1 = vector.load %arg5[%c0_1, %c0_2] : memref<32x96xf32, #tpu.memory_space<vmem>>, vector<32x96xf32>
    %cst = arith.constant dense<0.000000e+00> : vector<16x96xf32>
    %2 = tpu.matmul %0, %1, %cst {dimension_numbers = #tpu.dot_dimension_numbers<[1], [0], [0], [1], [0, 0, 1, 1], [], []>} : vector<16x32xf32>, vector<32x96xf32>, vector<16x96xf32> -> vector<16x96xf32>
    %c0_3 = arith.constant 0 : index
    %c0_4 = arith.constant 0 : index
    %3 = vector.load %arg6[%c0_3, %c0_4] : memref<1x96xf32, #tpu.memory_space<vmem>>, vector<1x96xf32>
    %4 = vector.broadcast %3 : vector<1x96xf32> to vector<16x96xf32>
    %5 = arith.addf %2, %4 : vector<16x96xf32>
    %6 = vector.extract_strided_slice %5 {offsets = [0, 0], sizes = [16, 32], strides = [1, 1]} : vector<16x96xf32> to vector<16x32xf32>
    %7 = vector.extract_strided_slice %5 {offsets = [0, 32], sizes = [16, 32], strides = [1, 1]} : vector<16x96xf32> to vector<16x32xf32>
    %8 = vector.extract_strided_slice %5 {offsets = [0, 64], sizes = [16, 32], strides = [1, 1]} : vector<16x96xf32> to vector<16x32xf32>
    %c0_5 = arith.constant 0 : index
    %c0_6 = arith.constant 0 : index
    %9 = vector.load %arg4[%c0_5, %c0_6] : memref<64x32xf32, #tpu.memory_space<vmem>>, vector<64x32xf32>
    %10 = vector.extract_strided_slice %6 {offsets = [0, 0], sizes = [8, 32], strides = [1, 1]} : vector<16x32xf32> to vector<8x32xf32>
    %11 = vector.extract_strided_slice %6 {offsets = [0, 0], sizes = [8, 32], strides = [1, 1]} : vector<16x32xf32> to vector<8x32xf32>
    %12 = vector.extract_strided_slice %6 {offsets = [0, 0], sizes = [8, 32], strides = [1, 1]} : vector<16x32xf32> to vector<8x32xf32>
    %13 = vector.extract_strided_slice %6 {offsets = [0, 0], sizes = [8, 32], strides = [1, 1]} : vector<16x32xf32> to vector<8x32xf32>
    %14 = vector.extract_strided_slice %6 {offsets = [8, 0], sizes = [8, 32], strides = [1, 1]} : vector<16x32xf32> to vector<8x32xf32>
    %15 = vector.extract_strided_slice %6 {offsets = [8, 0], sizes = [8, 32], strides = [1, 1]} : vector<16x32xf32> to vector<8x32xf32>
    %16 = vector.extract_strided_slice %6 {offsets = [8, 0], sizes = [8, 32], strides = [1, 1]} : vector<16x32xf32> to vector<8x32xf32>
    %17 = vector.extract_strided_slice %6 {offsets = [8, 0], sizes = [8, 32], strides = [1, 1]} : vector<16x32xf32> to vector<8x32xf32>
    %18 = tpu.concatenate %10, %11, %12, %13, %14, %15, %16, %17 in 0 : vector<8x32xf32>, vector<8x32xf32>, vector<8x32xf32>, vector<8x32xf32>, vector<8x32xf32>, vector<8x32xf32>, vector<8x32xf32>, vector<8x32xf32> -> vector<64x32xf32>
    %19 = arith.mulf %18, %9 : vector<64x32xf32>
    %cst_7 = arith.constant dense<0.000000e+00> : vector<64x16xf32>
    %20 = tpu.matmul %19, %7, %cst_7 {dimension_numbers = #tpu.dot_dimension_numbers<[1], [1], [0], [0], [0, 0, 1, 0], [], []>} : vector<64x32xf32>, vector<16x32xf32>, vector<64x16xf32> -> vector<64x16xf32>
    %c0_8 = arith.constant 0 : index
    %c0_9 = arith.constant 0 : index
    %21 = vector.load %arg2[%c0_8, %c0_9] : memref<1x16xf32, #tpu.memory_space<vmem>>, vector<1x16xf32>
    %22 = vector.broadcast %21 : vector<1x16xf32> to vector<64x16xf32>
    %23 = arith.addf %20, %22 : vector<64x16xf32>
    %c0_10 = arith.constant 0 : index
    %c0_11 = arith.constant 0 : index
    %24 = vector.load %arg3[%c0_10, %c0_11] : memref<64x16xf32, #tpu.memory_space<vmem>>, vector<64x16xf32>
    %25 = arith.addf %23, %24 : vector<64x16xf32>
    %cst_12 = arith.constant dense<0xFF800000> : vector<64xf32>
    %26 = vector.multi_reduction <maximumf>, %25, %cst_12 [1] : vector<64x16xf32> to vector<64xf32>
    %27 = vector.shape_cast %26 : vector<64xf32> to vector<64x1xf32>
    %28 = vector.broadcast %27 : vector<64x1xf32> to vector<64x16xf32>
    %29 = arith.subf %25, %28 : vector<64x16xf32>
    %30 = math.exp %29 : vector<64x16xf32>
    %cst_13 = arith.constant dense<0.000000e+00> : vector<64xf32>
    %31 = vector.multi_reduction <add>, %30, %cst_13 [1] : vector<64x16xf32> to vector<64xf32>
    %32 = vector.shape_cast %31 : vector<64xf32> to vector<64x1xf32>
    %33 = vector.broadcast %32 : vector<64x1xf32> to vector<64x16xf32>
    %34 = arith.divf %30, %33 : vector<64x16xf32>
    %cst_14 = arith.constant dense<0.000000e+00> : vector<64x32xf32>
    %35 = tpu.matmul %34, %8, %cst_14 {dimension_numbers = #tpu.dot_dimension_numbers<[1], [0], [0], [1], [0, 0, 1, 1], [], []>} : vector<64x16xf32>, vector<16x32xf32>, vector<64x32xf32> -> vector<64x32xf32>
    %36 = arith.mulf %35, %9 : vector<64x32xf32>
    %37 = vector.extract_strided_slice %36 {offsets = [0, 0], sizes = [8, 32], strides = [1, 1]} : vector<64x32xf32> to vector<8x32xf32>
    %38 = vector.extract_strided_slice %36 {offsets = [8, 0], sizes = [8, 32], strides = [1, 1]} : vector<64x32xf32> to vector<8x32xf32>
    %39 = arith.addf %37, %38 : vector<8x32xf32>
    %40 = vector.extract_strided_slice %36 {offsets = [16, 0], sizes = [8, 32], strides = [1, 1]} : vector<64x32xf32> to vector<8x32xf32>
    %41 = arith.addf %39, %40 : vector<8x32xf32>
    %42 = vector.extract_strided_slice %36 {offsets = [24, 0], sizes = [8, 32], strides = [1, 1]} : vector<64x32xf32> to vector<8x32xf32>
    %43 = arith.addf %41, %42 : vector<8x32xf32>
    %44 = vector.extract_strided_slice %36 {offsets = [32, 0], sizes = [8, 32], strides = [1, 1]} : vector<64x32xf32> to vector<8x32xf32>
    %45 = vector.extract_strided_slice %36 {offsets = [40, 0], sizes = [8, 32], strides = [1, 1]} : vector<64x32xf32> to vector<8x32xf32>
    %46 = arith.addf %44, %45 : vector<8x32xf32>
    %47 = vector.extract_strided_slice %36 {offsets = [48, 0], sizes = [8, 32], strides = [1, 1]} : vector<64x32xf32> to vector<8x32xf32>
    %48 = arith.addf %46, %47 : vector<8x32xf32>
    %49 = vector.extract_strided_slice %36 {offsets = [56, 0], sizes = [8, 32], strides = [1, 1]} : vector<64x32xf32> to vector<8x32xf32>
    %50 = arith.addf %48, %49 : vector<8x32xf32>
    %51 = tpu.concatenate %43, %50 in 0 : vector<8x32xf32>, vector<8x32xf32> -> vector<16x32xf32>
    %c0_15 = arith.constant 0 : index
    %c0_16 = arith.constant 0 : index
    %52 = vector.load %arg7[%c0_15, %c0_16] : memref<32x32xf32, #tpu.memory_space<vmem>>, vector<32x32xf32>
    %cst_17 = arith.constant dense<0.000000e+00> : vector<16x32xf32>
    %53 = tpu.matmul %51, %52, %cst_17 {dimension_numbers = #tpu.dot_dimension_numbers<[1], [0], [0], [1], [0, 0, 1, 1], [], []>} : vector<16x32xf32>, vector<32x32xf32>, vector<16x32xf32> -> vector<16x32xf32>
    %c0_18 = arith.constant 0 : index
    %c0_19 = arith.constant 0 : index
    %54 = vector.load %arg8[%c0_18, %c0_19] : memref<1x32xf32, #tpu.memory_space<vmem>>, vector<1x32xf32>
    %55 = vector.broadcast %54 : vector<1x32xf32> to vector<16x32xf32>
    %56 = arith.addf %53, %55 : vector<16x32xf32>
    %57 = arith.addf %56, %0 : vector<16x32xf32>
    %c0_20 = arith.constant 0 : index
    %c0_21 = arith.constant 0 : index
    %58 = vector.load %arg9[%c0_20, %c0_21] : memref<1x32xf32, #tpu.memory_space<vmem>>, vector<1x32xf32>
    %c0_22 = arith.constant 0 : index
    %c0_23 = arith.constant 0 : index
    %59 = vector.load %arg10[%c0_22, %c0_23] : memref<1x32xf32, #tpu.memory_space<vmem>>, vector<1x32xf32>
    %cst_24 = arith.constant dense<0.000000e+00> : vector<16xf32>
    %60 = vector.multi_reduction <add>, %57, %cst_24 [1] : vector<16x32xf32> to vector<16xf32>
    %61 = vector.shape_cast %60 : vector<16xf32> to vector<16x1xf32>
    %cst_25 = arith.constant 3.200000e+01 : f32
    %62 = vector.broadcast %cst_25 : f32 to vector<16x1xf32>
    %63 = arith.divf %61, %62 : vector<16x1xf32>
    %64 = vector.broadcast %63 : vector<16x1xf32> to vector<16x32xf32>
    %65 = arith.subf %57, %64 : vector<16x32xf32>
    %66 = arith.mulf %65, %65 : vector<16x32xf32>
    %cst_26 = arith.constant dense<0.000000e+00> : vector<16xf32>
    %67 = vector.multi_reduction <add>, %66, %cst_26 [1] : vector<16x32xf32> to vector<16xf32>
    %68 = vector.shape_cast %67 : vector<16xf32> to vector<16x1xf32>
    %cst_27 = arith.constant 3.200000e+01 : f32
    %69 = vector.broadcast %cst_27 : f32 to vector<16x1xf32>
    %70 = arith.divf %68, %69 : vector<16x1xf32>
    %71 = vector.broadcast %63 : vector<16x1xf32> to vector<16x32xf32>
    %72 = arith.subf %57, %71 : vector<16x32xf32>
    %cst_28 = arith.constant 9.99999996E-13 : f32
    %73 = vector.broadcast %cst_28 : f32 to vector<16x1xf32>
    %74 = arith.addf %70, %73 : vector<16x1xf32>
    %75 = math.sqrt %74 : vector<16x1xf32>
    %76 = vector.broadcast %75 : vector<16x1xf32> to vector<16x32xf32>
    %77 = arith.divf %72, %76 : vector<16x32xf32>
    %78 = vector.broadcast %58 : vector<1x32xf32> to vector<16x32xf32>
    %79 = arith.mulf %78, %77 : vector<16x32xf32>
    %80 = vector.broadcast %59 : vector<1x32xf32> to vector<16x32xf32>
    %81 = arith.addf %79, %80 : vector<16x32xf32>
    %c0_29 = arith.constant 0 : index
    %c0_30 = arith.constant 0 : index
    %82 = vector.load %arg11[%c0_29, %c0_30] : memref<32x64xf32, #tpu.memory_space<vmem>>, vector<32x64xf32>
    %cst_31 = arith.constant dense<0.000000e+00> : vector<16x64xf32>
    %83 = tpu.matmul %81, %82, %cst_31 {dimension_numbers = #tpu.dot_dimension_numbers<[1], [0], [0], [1], [0, 0, 1, 1], [], []>} : vector<16x32xf32>, vector<32x64xf32>, vector<16x64xf32> -> vector<16x64xf32>
    %c0_32 = arith.constant 0 : index
    %c0_33 = arith.constant 0 : index
    %84 = vector.load %arg12[%c0_32, %c0_33] : memref<1x64xf32, #tpu.memory_space<vmem>>, vector<1x64xf32>
    %85 = vector.broadcast %84 : vector<1x64xf32> to vector<16x64xf32>
    %86 = arith.addf %83, %85 : vector<16x64xf32>
    %cst_34 = arith.constant 5.000000e-01 : f32
    %87 = vector.broadcast %cst_34 : f32 to vector<16x64xf32>
    %88 = arith.mulf %86, %87 : vector<16x64xf32>
    %cst_35 = arith.constant 1.41421354 : f32
    %89 = vector.broadcast %cst_35 : f32 to vector<16x64xf32>
    %90 = arith.divf %86, %89 : vector<16x64xf32>
    %91 = math.erf %90 : vector<16x64xf32>
    %cst_36 = arith.constant 1.000000e+00 : f32
    %92 = vector.broadcast %cst_36 : f32 to vector<16x64xf32>
    %93 = arith.addf %92, %91 : vector<16x64xf32>
    %94 = arith.mulf %88, %93 : vector<16x64xf32>
    %c0_37 = arith.constant 0 : index
    %c0_38 = arith.constant 0 : index
    %95 = vector.load %arg13[%c0_37, %c0_38] : memref<64x32xf32, #tpu.memory_space<vmem>>, vector<64x32xf32>
    %cst_39 = arith.constant dense<0.000000e+00> : vector<16x32xf32>
    %96 = tpu.matmul %94, %95, %cst_39 {dimension_numbers = #tpu.dot_dimension_numbers<[1], [0], [0], [1], [0, 0, 1, 1], [], []>} : vector<16x64xf32>, vector<64x32xf32>, vector<16x32xf32> -> vector<16x32xf32>
    %c0_40 = arith.constant 0 : index
    %c0_41 = arith.constant 0 : index
    %97 = vector.load %arg14[%c0_40, %c0_41] : memref<1x32xf32, #tpu.memory_space<vmem>>, vector<1x32xf32>
    %98 = vector.broadcast %97 : vector<1x32xf32> to vector<16x32xf32>
    %99 = arith.addf %96, %98 : vector<16x32xf32>
    %100 = arith.addf %99, %81 : vector<16x32xf32>
    %c0_42 = arith.constant 0 : index
    %c0_43 = arith.constant 0 : index
    %101 = vector.load %arg15[%c0_42, %c0_43] : memref<1x32xf32, #tpu.memory_space<vmem>>, vector<1x32xf32>
    %c0_44 = arith.constant 0 : index
    %c0_45 = arith.constant 0 : index
    %102 = vector.load %arg16[%c0_44, %c0_45] : memref<1x32xf32, #tpu.memory_space<vmem>>, vector<1x32xf32>
    %cst_46 = arith.constant dense<0.000000e+00> : vector<16xf32>
    %103 = vector.multi_reduction <add>, %100, %cst_46 [1] : vector<16x32xf32> to vector<16xf32>
    %104 = vector.shape_cast %103 : vector<16xf32> to vector<16x1xf32>
    %cst_47 = arith.constant 3.200000e+01 : f32
    %105 = vector.broadcast %cst_47 : f32 to vector<16x1xf32>
    %106 = arith.divf %104, %105 : vector<16x1xf32>
    %107 = vector.broadcast %106 : vector<16x1xf32> to vector<16x32xf32>
    %108 = arith.subf %100, %107 : vector<16x32xf32>
    %109 = arith.mulf %108, %108 : vector<16x32xf32>
    %cst_48 = arith.constant dense<0.000000e+00> : vector<16xf32>
    %110 = vector.multi_reduction <add>, %109, %cst_48 [1] : vector<16x32xf32> to vector<16xf32>
    %111 = vector.shape_cast %110 : vector<16xf32> to vector<16x1xf32>
    %cst_49 = arith.constant 3.200000e+01 : f32
    %112 = vector.broadcast %cst_49 : f32 to vector<16x1xf32>
    %113 = arith.divf %111, %112 : vector<16x1xf32>
    %114 = vector.broadcast %106 : vector<16x1xf32> to vector<16x32xf32>
    %115 = arith.subf %100, %114 : vector<16x32xf32>
    %cst_50 = arith.constant 9.99999996E-13 : f32
    %116 = vector.broadcast %cst_50 : f32 to vector<16x1xf32>
    %117 = arith.addf %113, %116 : vector<16x1xf32>
    %118 = math.sqrt %117 : vector<16x1xf32>
    %119 = vector.broadcast %118 : vector<16x1xf32> to vector<16x32xf32>
    %120 = arith.divf %115, %119 : vector<16x32xf32>
    %121 = vector.broadcast %101 : vector<1x32xf32> to vector<16x32xf32>
    %122 = arith.mulf %121, %120 : vector<16x32xf32>
    %123 = vector.broadcast %102 : vector<1x32xf32> to vector<16x32xf32>
    %124 = arith.addf %122, %123 : vector<16x32xf32>
    %c0_51 = arith.constant 0 : index
    %c0_52 = arith.constant 0 : index
    %125 = vector.load %arg17[%c0_51, %c0_52] : memref<16x32xf32, #tpu.memory_space<vmem>>, vector<16x32xf32>
    tpu.vector_store %arg17[%c0_51, %c0_52], %124 {strides = array<i32>} : memref<16x32xf32, #tpu.memory_space<vmem>>, vector<16x32xf32>,
    return
  }
  func.func @transform_0(%arg0: i32) -> (i32, i32) {
    %c0_i32 = arith.constant 0 : i32
    %c0_i32_0 = arith.constant 0 : i32
    %c0_i32_1 = arith.constant 0 : i32
    return %c0_i32, %c0_i32_0 : i32, i32
  }
  func.func @transform_1(%arg0: i32) -> (i32, i32) {
    %c0_i32 = arith.constant 0 : i32
    %c0_i32_0 = arith.constant 0 : i32
    %c0_i32_1 = arith.constant 0 : i32
    return %c0_i32, %c0_i32_0 : i32, i32
  }
  func.func @transform_2(%arg0: i32) -> (i32, i32) {
    %c0_i32 = arith.constant 0 : i32
    %c0_i32_0 = arith.constant 0 : i32
    %c0_i32_1 = arith.constant 0 : i32
    return %c0_i32, %c0_i32_0 : i32, i32
  }
  func.func @transform_3(%arg0: i32) -> (i32, i32) {
    %c0_i32 = arith.constant 0 : i32
    %c0_i32_0 = arith.constant 0 : i32
    %c0_i32_1 = arith.constant 0 : i32
    return %c0_i32, %c0_i32_0 : i32, i32
  }
  func.func @transform_4(%arg0: i32) -> (i32, i32) {
    %c0_i32 = arith.constant 0 : i32
    %c0_i32_0 = arith.constant 0 : i32
    %c0_i32_1 = arith.constant 0 : i32
    return %c0_i32, %c0_i32_0 : i32, i32
  }
  func.func @transform_5(%arg0: i32) -> (i32, i32) {
    %c0_i32 = arith.constant 0 : i32
    %c0_i32_0 = arith.constant 0 : i32
    %c0_i32_1 = arith.constant 0 : i32
    return %c0_i32, %c0_i32_0 : i32, i32
  }
  func.func @transform_6(%arg0: i32) -> (i32, i32) {
    %c0_i32 = arith.constant 0 : i32
    %c0_i32_0 = arith.constant 0 : i32
    %c0_i32_1 = arith.constant 0 : i32
    return %c0_i32, %c0_i32_0 : i32, i32
  }
  func.func @transform_7(%arg0: i32) -> (i32, i32) {
    %c0_i32 = arith.constant 0 : i32
    %c0_i32_0 = arith.constant 0 : i32
    %c0_i32_1 = arith.constant 0 : i32
    return %c0_i32, %c0_i32_0 : i32, i32
  }
  func.func @transform_8(%arg0: i32) -> (i32, i32) {
    %c0_i32 = arith.constant 0 : i32
    %c0_i32_0 = arith.constant 0 : i32
    %c0_i32_1 = arith.constant 0 : i32
    return %c0_i32, %c0_i32_0 : i32, i32
  }
  func.func @transform_9(%arg0: i32) -> (i32, i32) {
    %c0_i32 = arith.constant 0 : i32
    %c0_i32_0 = arith.constant 0 : i32
    %c0_i32_1 = arith.constant 0 : i32
    return %c0_i32, %c0_i32_0 : i32, i32
  }
  func.func @transform_10(%arg0: i32) -> (i32, i32) {
    %c0_i32 = arith.constant 0 : i32
    %c0_i32_0 = arith.constant 0 : i32
    %c0_i32_1 = arith.constant 0 : i32
    return %c0_i32, %c0_i32_0 : i32, i32
  }
  func.func @transform_11(%arg0: i32) -> (i32, i32) {
    %c0_i32 = arith.constant 0 : i32
    %c0_i32_0 = arith.constant 0 : i32
    %c0_i32_1 = arith.constant 0 : i32
    return %c0_i32, %c0_i32_0 : i32, i32
  }
  func.func @transform_12(%arg0: i32) -> (i32, i32) {
    %c0_i32 = arith.constant 0 : i32
    %c0_i32_0 = arith.constant 0 : i32
    %c0_i32_1 = arith.constant 0 : i32
    return %c0_i32, %c0_i32_0 : i32, i32
  }
  func.func @transform_13(%arg0: i32) -> (i32, i32) {
    %c0_i32 = arith.constant 0 : i32
    %c0_i32_0 = arith.constant 0 : i32
    %c0_i32_1 = arith.constant 0 : i32
    return %c0_i32, %c0_i32_0 : i32, i32
  }
  func.func @transform_14(%arg0: i32) -> (i32, i32) {
    %c0_i32 = arith.constant 0 : i32
    %c0_i32_0 = arith.constant 0 : i32
    %c0_i32_1 = arith.constant 0 : i32
    return %c0_i32, %c0_i32_0 : i32, i32
  }
  func.func @transform_15(%arg0: i32) -> (i32, i32) {
    %c0_i32 = arith.constant 0 : i32
    %c0_i32_0 = arith.constant 0 : i32
    %c0_i32_1 = arith.constant 0 : i32
    return %c0_i32, %c0_i32_0 : i32, i32
  }
  func.func @transform_16(%arg0: i32) -> (i32, i32) {
    %c0_i32 = arith.constant 0 : i32
    %c0_i32_0 = arith.constant 0 : i32
    %c0_i32_1 = arith.constant 0 : i32
    return %c0_i32, %c0_i32_0 : i32, i32
  }
}

</mosaic_0001>

<llo_original>
// kernel: tpu_custom_call.1
$region0: #{tpu_custom_call.1}
  #allocation0 [shape = 'u32[]', space=smem, size = 0x4, offset = 0x4, fixed_abs, tag = 'smem constant byte address 0x4 - core index']
  #allocation1 [shape = 'u32[144,128]{1,0:T(1,128)}', space=vmem, size = 0x12000, scoped, tag = 'internal scratch']
  %s0 = inlined_call_operand.vmem [shape: f32[16,32], index: 0, kind: input, shape index: {}]
  %s1 = inlined_call_operand.vmem [shape: f32[1,16], index: 1, kind: input, shape index: {}]
  %s2 = inlined_call_operand.vmem [shape: f32[64,16], index: 2, kind: input, shape index: {}]
  %s3 = inlined_call_operand.vmem [shape: f32[64,32], index: 3, kind: input, shape index: {}]
  %s4 = inlined_call_operand.vmem [shape: f32[32,96], index: 4, kind: input, shape index: {}]
  %s5 = inlined_call_operand.vmem [shape: f32[1,96], index: 5, kind: input, shape index: {}]
  %s6 = inlined_call_operand.vmem [shape: f32[32,32], index: 6, kind: input, shape index: {}]
  %s7 = inlined_call_operand.vmem [shape: f32[1,32], index: 7, kind: input, shape index: {}]
  %s8 = inlined_call_operand.vmem [shape: f32[1,32], index: 8, kind: input, shape index: {}]
  %s9 = inlined_call_operand.vmem [shape: f32[1,32], index: 9, kind: input, shape index: {}]
  %s10 = inlined_call_operand.vmem [shape: f32[32,64], index: 10, kind: input, shape index: {}]
  %s11 = inlined_call_operand.vmem [shape: f32[1,64], index: 11, kind: input, shape index: {}]
  %s12 = inlined_call_operand.vmem [shape: f32[64,32], index: 12, kind: input, shape index: {}]
  %s13 = inlined_call_operand.vmem [shape: f32[1,32], index: 13, kind: input, shape index: {}]
  %s14 = inlined_call_operand.vmem [shape: f32[1,32], index: 14, kind: input, shape index: {}]
  %s15 = inlined_call_operand.vmem [shape: f32[1,32], index: 15, kind: input, shape index: {}]
  %s16 = inlined_call_operand.hbm [shape: f32[16,32], index: 16, kind: output, shape index: {}]
  %s17 = sld [smem:[#allocation0]]
  $region74: #{tpu_custom_call.1} parent=0
    _
  %s19 = ssub.s32 1, %s17
  %s20 = scalar_select 0, %s19, %s17
  $region1: #{tpu_custom_call.1} parent=0
    #allocation2 [shape = 'u8[8192]{0}', space=vmem, size = 0x2000, scoped, tag = 'output window, operand 0, single buffered']
    #allocation3 [shape = 's32[1]{0}', space=sflag, size = 0x4, scoped, tag = 'scoped memory for tpu_custom_call.1']
    %21 = vsyncpa [#allocation3], 0
    // Predicated region
    $region2: #{tpu_custom_call.1} parent=1 // pred_check
      _
    $region3: #{tpu_custom_call.1} parent=1 // pred_check_branch
      %23 = sbr.rel (0) target = $region5
    $region4: #{tpu_custom_call.1} parent=1 // pred_region
      _
    $region5: #{tpu_custom_call.1} parent=1 // pred_fallthru
      _
    // Predicated region
    $region6: #{tpu_custom_call.1} parent=1 // pred_check
      _
    $region7: #{tpu_custom_call.1} parent=1 // pred_check_branch
      %25 = sbr.rel (0) target = $region9
    $region8: #{tpu_custom_call.1} parent=1 // pred_region
      _
    $region9: #{tpu_custom_call.1} parent=1 // pred_fallthru
      _
    // Predicated region
    $region10: #{tpu_custom_call.1} parent=1 // pred_check
      _
    $region11: #{tpu_custom_call.1} parent=1 // pred_check_branch
      %27 = sbr.rel (0) target = $region13
    $region12: #{tpu_custom_call.1} parent=1 // pred_region
      _
    $region13: #{tpu_custom_call.1} parent=1 // pred_fallthru
      _
    // Predicated region
    $region14: #{tpu_custom_call.1} parent=1 // pred_check
      _
    $region15: #{tpu_custom_call.1} parent=1 // pred_check_branch
      %29 = sbr.rel (0) target = $region17
    $region16: #{tpu_custom_call.1} parent=1 // pred_region
      _
    $region17: #{tpu_custom_call.1} parent=1 // pred_fallthru
      _
    // Predicated region
    $region18: #{tpu_custom_call.1} parent=1 // pred_check
      _
    $region19: #{tpu_custom_call.1} parent=1 // pred_check_branch
      %31 = sbr.rel (0) target = $region21
    $region20: #{tpu_custom_call.1} parent=1 // pred_region
      _
    $region21: #{tpu_custom_call.1} parent=1 // pred_fallthru
      _
    // Predicated region
    $region22: #{tpu_custom_call.1} parent=1 // pred_check
      _
    $region23: #{tpu_custom_call.1} parent=1 // pred_check_branch
      %33 = sbr.rel (0) target = $region25
    $region24: #{tpu_custom_call.1} parent=1 // pred_region
      _
    $region25: #{tpu_custom_call.1} parent=1 // pred_fallthru
      _
    // Predicated region
    $region26: #{tpu_custom_call.1} parent=1 // pred_check
      _
    $region27: #{tpu_custom_call.1} parent=1 // pred_check_branch
      %35 = sbr.rel (0) target = $region29
    $region28: #{tpu_custom_call.1} parent=1 // pred_region
      _
    $region29: #{tpu_custom_call.1} parent=1 // pred_fallthru
      _
    // Predicated region
    $region30: #{tpu_custom_call.1} parent=1 // pred_check
      _
    $region31: #{tpu_custom_call.1} parent=1 // pred_check_branch
      %37 = sbr.rel (0) target = $region33
    $region32: #{tpu_custom_call.1} parent=1 // pred_region
      _
    $region33: #{tpu_custom_call.1} parent=1 // pred_fallthru
      _
    // Predicated region
    $region34: #{tpu_custom_call.1} parent=1 // pred_check
      _
    $region35: #{tpu_custom_call.1} parent=1 // pred_check_branch
      %39 = sbr.rel (0) target = $region37
    $region36: #{tpu_custom_call.1} parent=1 // pred_region
      _
    $region37: #{tpu_custom_call.1} parent=1 // pred_fallthru
      _
    // Predicated region
    $region38: #{tpu_custom_call.1} parent=1 // pred_check
      _
    $region39: #{tpu_custom_call.1} parent=1 // pred_check_branch
      %41 = sbr.rel (0) target = $region41
    $region40: #{tpu_custom_call.1} parent=1 // pred_region
      _
    $region41: #{tpu_custom_call.1} parent=1 // pred_fallthru
      _
    // Predicated region
    $region42: #{tpu_custom_call.1} parent=1 // pred_check
      _
    $region43: #{tpu_custom_call.1} parent=1 // pred_check_branch
      %43 = sbr.rel (0) target = $region45
    $region44: #{tpu_custom_call.1} parent=1 // pred_region
      _
    $region45: #{tpu_custom_call.1} parent=1 // pred_fallthru
      _
    // Predicated region
    $region46: #{tpu_custom_call.1} parent=1 // pred_check
      _
    $region47: #{tpu_custom_call.1} parent=1 // pred_check_branch
      %45 = sbr.rel (0) target = $region49
    $region48: #{tpu_custom_call.1} parent=1 // pred_region
      _
    $region49: #{tpu_custom_call.1} parent=1 // pred_fallthru
      _
    // Predicated region
    $region50: #{tpu_custom_call.1} parent=1 // pred_check
      _
    $region51: #{tpu_custom_call.1} parent=1 // pred_check_branch
      %47 = sbr.rel (0) target = $region53
    $region52: #{tpu_custom_call.1} parent=1 // pred_region
      _
    $region53: #{tpu_custom_call.1} parent=1 // pred_fallthru
      _
    // Predicated region
    $region54: #{tpu_custom_call.1} parent=1 // pred_check
      _
    $region55: #{tpu_custom_call.1} parent=1 // pred_check_branch
      %49 = sbr.rel (0) target = $region57
    $region56: #{tpu_custom_call.1} parent=1 // pred_region
      _
    $region57: #{tpu_custom_call.1} parent=1 // pred_fallthru
      _
    // Predicated region
    $region58: #{tpu_custom_call.1} parent=1 // pred_check
      _
    $region59: #{tpu_custom_call.1} parent=1 // pred_check_branch
      %51 = sbr.rel (0) target = $region61
    $region60: #{tpu_custom_call.1} parent=1 // pred_region
      _
    $region61: #{tpu_custom_call.1} parent=1 // pred_fallthru
      _
    // Predicated region
    $region62: #{tpu_custom_call.1} parent=1 // pred_check
      _
    $region63: #{tpu_custom_call.1} parent=1 // pred_check_branch
      %53 = sbr.rel (0) target = $region65
    $region64: #{tpu_custom_call.1} parent=1 // pred_region
      _
    $region65: #{tpu_custom_call.1} parent=1 // pred_fallthru
      _
    %v54 = vld [vmem:[%s0] sm:$0xff]
    %v55 = vld [vmem:[%s0 + $0x8] sm:$0xff]
    %v56 = vld [vmem:[%s4] sm:$0xff]
    %v57 = vld [vmem:[%s4 + $0x8] sm:$0xff]
    %v58 = vld [vmem:[%s4 + $0x10] sm:$0xff]
    %v59 = vld [vmem:[%s4 + $0x18] sm:$0xff]
    %v60 = vld [vmem:[%s5] sm:$0x1]
    %v62 = vlaneseq
    %v63 = vshrl.u32 %v62, 7
    %v64 = vsub.s32 0, %v63
    %v65 = vrot.slane %v60, %v64
    %vm67 = vcmask 261120
    %v69 = vsel %vm67, %v54, 0
    %v72 = vsel %vm67, %v55, 0
    %74 = vmatprep.subr.mxu0 0.0
    %75 = vmatpush1.msra.mxu0 0.0
    %76 = vmatprep.subr.mxu0 0.0
    %77 = vmatpush1.msra.mxu0 0.0
    %78 = vmatprep.subr.mxu0 0.0
    %79 = vmatpush1.msra.mxu0 0.0
    %80 = vmatprep.subr.mxu0 0.0
    %81 = vmatpush1.msra.mxu0 0.0
    %82 = vmatprep.subr.mxu0 0.0
    %83 = vmatpush1.msra.mxu0 0.0
    %84 = vmatprep.subr.mxu0 0.0
    %85 = vmatpush1.msra.mxu0 0.0
    %86 = vmatprep.subr.mxu0 0.0
    %87 = vmatpush1.msra.mxu0 0.0
    %88 = vmatprep.subr.mxu0 0.0
    %89 = vmatpush1.msra.mxu0 0.0
    %90 = vmatprep.subr.mxu0 0.0
    %91 = vmatpush1.msra.mxu0 0.0
    %92 = vmatprep.subr.mxu0 0.0
    %93 = vmatpush1.msra.mxu0 0.0
    %94 = vmatprep.subr.mxu0 0.0
    %95 = vmatpush1.msra.mxu0 0.0
    %96 = vmatprep.subr.mxu0 0.0
    %97 = vmatpush1.msra.mxu0 0.0
    %98 = vmatprep.subr.mxu0 0.0
    %99 = vmatpush1.msra.mxu0 %v59
    %100 = vmatprep.subr.mxu0 0.0
    %101 = vmatpush1.msra.mxu0 %v58
    %102 = vmatprep.subr.mxu0 0.0
    %103 = vmatpush1.msra.mxu0 %v57
    %104 = vmatprep.subr.mxu0 0.0
    %105 = vmatpush1.msra.mxu0 %v56
    %106 = vmatprep.subr.mxu0 0.0
    %107 = vmatpush2.msra.mxu0 0.0
    %108 = vmatprep.subr.mxu0 0.0
    %109 = vmatpush2.msra.mxu0 0.0
    %110 = vmatprep.subr.mxu0 0.0
    %111 = vmatpush2.msra.mxu0 0.0
    %112 = vmatprep.subr.mxu0 0.0
    %113 = vmatpush2.msra.mxu0 0.0
    %114 = vmatprep.subr.mxu0 0.0
    %115 = vmatpush2.msra.mxu0 0.0
    %116 = vmatprep.subr.mxu0 0.0
    %117 = vmatpush2.msra.mxu0 0.0
    %118 = vmatprep.subr.mxu0 0.0
    %119 = vmatpush2.msra.mxu0 0.0
    %120 = vmatprep.subr.mxu0 0.0
    %121 = vmatpush2.msra.mxu0 0.0
    %122 = vmatprep.subr.mxu0 0.0
    %123 = vmatpush2.msra.mxu0 0.0
    %124 = vmatprep.subr.mxu0 0.0
    %125 = vmatpush2.msra.mxu0 0.0
    %126 = vmatprep.subr.mxu0 0.0
    %127 = vmatpush2.msra.mxu0 0.0
    %128 = vmatprep.subr.mxu0 0.0
    %129 = vmatpush2.msra.mxu0 0.0
    %130 = vmatprep.subr.mxu0 0.0
    %131 = vmatpush2.msra.mxu0 0.0
    %132 = vmatprep.subr.mxu0 0.0
    %133 = vmatpush2.msra.mxu0 0.0
    %134 = vmatprep.subr.mxu0 0.0
    %135 = vmatpush2.msra.mxu0 0.0
    %136 = vmatprep.subr.mxu0 0.0
    %137 = vmatpush2.msra.mxu0 0.0
    %138 = vmatprep.mubr.f32.mxu0 0.0
    %139 = vmatmul.mubr.f32.gmra.mxu0 %v69
    %v140 = vpop.f32.mrf.mxu0
    %v141 = vadd.f32 %v65, %v140
    %v142 = vpop.f32.mrf.mxu0
    %143 = vmatprep.mubr.f32.mxu0 0.0
    %144 = vmatmul.mubr.f32.gmra.mxu0 %v72
    %v145 = vpop.f32.mrf.mxu0
    %v146 = vadd.f32 %v65, %v145
    %v147 = vpop.f32.mrf.mxu0
    %148 = vdwg.mxu0
    %v149 = vld [vmem:[%s3] sm:$0xff]
    %v150 = vld [vmem:[%s3 + $0x8] sm:$0xff]
    %v151 = vld [vmem:[%s3 + $0x10] sm:$0xff]
    %v152 = vld [vmem:[%s3 + $0x18] sm:$0xff]
    %v153 = vld [vmem:[%s3 + $0x20] sm:$0xff]
    %v154 = vld [vmem:[%s3 + $0x28] sm:$0xff]
    %v155 = vld [vmem:[%s3 + $0x30] sm:$0xff]
    %v156 = vld [vmem:[%s3 + $0x38] sm:$0xff]
    %v157 = vmul.f32 %v141, %v149
    %v158 = vmul.f32 %v141, %v150
    %v159 = vmul.f32 %v141, %v151
    %v160 = vmul.f32 %v141, %v152
    %v161 = vmul.f32 %v146, %v153
    %v162 = vmul.f32 %v146, %v154
    %v163 = vmul.f32 %v146, %v155
    %v164 = vmul.f32 %v146, %v156
    %v165 = vld [vmem:[%s1] sm:$0x1]
    %v167 = vlaneseq
    %v168 = vshrl.u32 %v167, 7
    %v169 = vsub.s32 0, %v168
    %v170 = vrot.slane %v165, %v169
    %174 = vrot.lane.b32.xlu0 %v141, 96
    %v175 = vpop.permute.xlu0 %174
    %176 = vrot.lane.b32.xlu0 %v146, 96
    %v177 = vpop.permute.xlu0 %176
    %v179 = vsel %vm67, %v157, 0
    %v182 = vsel %vm67, %v158, 0
    %v185 = vsel %vm67, %v159, 0
    %v188 = vsel %vm67, %v160, 0
    %v191 = vsel %vm67, %v161, 0
    %v194 = vsel %vm67, %v162, 0
    %v197 = vsel %vm67, %v163, 0
    %v200 = vsel %vm67, %v164, 0
    %v202 = vsel %vm67, %v175, 0
    %v204 = vsel %vm67, %v177, 0
    %206 = vmatprep.subr.mxu0 0.0
    %207 = vmatpush1.xpose.msra.mxu0 0.0
    %208 = vmatprep.subr.mxu0 0.0
    %209 = vmatpush1.xpose.msra.mxu0 0.0
    %210 = vmatprep.subr.mxu0 0.0
    %211 = vmatpush1.xpose.msra.mxu0 0.0
    %212 = vmatprep.subr.mxu0 0.0
    %213 = vmatpush1.xpose.msra.mxu0 0.0
    %214 = vmatprep.subr.mxu0 0.0
    %215 = vmatpush1.xpose.msra.mxu0 0.0
    %216 = vmatprep.subr.mxu0 0.0
    %217 = vmatpush1.xpose.msra.mxu0 0.0
    %218 = vmatprep.subr.mxu0 0.0
    %219 = vmatpush1.xpose.msra.mxu0 0.0
    %220 = vmatprep.subr.mxu0 0.0
    %221 = vmatpush1.xpose.msra.mxu0 0.0
    %222 = vmatprep.subr.mxu0 0.0
    %223 = vmatpush1.xpose.msra.mxu0 0.0
    %224 = vmatprep.subr.mxu0 0.0
    %225 = vmatpush1.xpose.msra.mxu0 0.0
    %226 = vmatprep.subr.mxu0 0.0
    %227 = vmatpush1.xpose.msra.mxu0 0.0
    %228 = vmatprep.subr.mxu0 0.0
    %229 = vmatpush1.xpose.msra.mxu0 0.0
    %230 = vmatprep.subr.mxu0 0.0
    %231 = vmatpush1.xpose.msra.mxu0 0.0
    %232 = vmatprep.subr.mxu0 0.0
    %233 = vmatpush1.xpose.msra.mxu0 0.0
    %234 = vmatprep.subr.mxu0 0.0
    %235 = vmatpush1.xpose.msra.mxu0 %v204
    %236 = vmatprep.subr.mxu0 0.0
    %237 = vmatpush1.xpose.msra.mxu0 %v202
    %238 = vmatprep.subr.mxu0 0.0
    %239 = vmatpush2.xpose.msra.mxu0 0.0
    %240 = vmatprep.subr.mxu0 0.0
    %241 = vmatpush2.xpose.msra.mxu0 0.0
    %242 = vmatprep.subr.mxu0 0.0
    %243 = vmatpush2.xpose.msra.mxu0 0.0
    %244 = vmatprep.subr.mxu0 0.0
    %245 = vmatpush2.xpose.msra.mxu0 0.0
    %246 = vmatprep.subr.mxu0 0.0
    %247 = vmatpush2.xpose.msra.mxu0 0.0
    %248 = vmatprep.subr.mxu0 0.0
    %249 = vmatpush2.xpose.msra.mxu0 0.0
    %250 = vmatprep.subr.mxu0 0.0
    %251 = vmatpush2.xpose.msra.mxu0 0.0
    %252 = vmatprep.subr.mxu0 0.0
    %253 = vmatpush2.xpose.msra.mxu0 0.0
    %254 = vmatprep.subr.mxu0 0.0
    %255 = vmatpush2.xpose.msra.mxu0 0.0
    %256 = vmatprep.subr.mxu0 0.0
    %257 = vmatpush2.xpose.msra.mxu0 0.0
    %258 = vmatprep.subr.mxu0 0.0
    %259 = vmatpush2.xpose.msra.mxu0 0.0
    %260 = vmatprep.subr.mxu0 0.0
    %261 = vmatpush2.xpose.msra.mxu0 0.0
    %262 = vmatprep.subr.mxu0 0.0
    %263 = vmatpush2.xpose.msra.mxu0 0.0
    %264 = vmatprep.subr.mxu0 0.0
    %265 = vmatpush2.xpose.msra.mxu0 0.0
    %266 = vmatprep.subr.mxu0 0.0
    %267 = vmatpush2.xpose.msra.mxu0 0.0
    %268 = vmatprep.subr.mxu0 0.0
    %269 = vmatpush2.xpose.msra.mxu0 0.0
    %270 = vmatprep.mubr.f32.mxu0 0.0
    %271 = vmatmul.mubr.f32.gmra.mxu0 %v179
    %v272 = vpop.f32.mrf.mxu0
    %v273 = vadd.f32 %v170, %v272
    %v274 = vpop.f32.mrf.mxu0
    %275 = vmatprep.mubr.f32.mxu0 0.0
    %276 = vmatmul.mubr.f32.gmra.mxu0 %v182
    %v277 = vpop.f32.mrf.mxu0
    %v278 = vadd.f32 %v170, %v277
    %v279 = vpop.f32.mrf.mxu0
    %280 = vmatprep.mubr.f32.mxu0 0.0
    %281 = vmatmul.mubr.f32.gmra.mxu0 %v185
    %v282 = vpop.f32.mrf.mxu0
    %v283 = vadd.f32 %v170, %v282
    %v284 = vpop.f32.mrf.mxu0
    %285 = vmatprep.mubr.f32.mxu0 0.0
    %286 = vmatmul.mubr.f32.gmra.mxu0 %v188
    %v287 = vpop.f32.mrf.mxu0
    %v288 = vadd.f32 %v170, %v287
    %v289 = vpop.f32.mrf.mxu0
    %290 = vmatprep.mubr.f32.mxu0 0.0
    %291 = vmatmul.mubr.f32.gmra.mxu0 %v191
    %v292 = vpop.f32.mrf.mxu0
    %v293 = vadd.f32 %v170, %v292
    %v294 = vpop.f32.mrf.mxu0
    %295 = vmatprep.mubr.f32.mxu0 0.0
    %296 = vmatmul.mubr.f32.gmra.mxu0 %v194
    %v297 = vpop.f32.mrf.mxu0
    %v298 = vadd.f32 %v170, %v297
    %v299 = vpop.f32.mrf.mxu0
    %300 = vmatprep.mubr.f32.mxu0 0.0
    %301 = vmatmul.mubr.f32.gmra.mxu0 %v197
    %v302 = vpop.f32.mrf.mxu0
    %v303 = vadd.f32 %v170, %v302
    %v304 = vpop.f32.mrf.mxu0
    %305 = vmatprep.mubr.f32.mxu0 0.0
    %306 = vmatmul.mubr.f32.gmra.mxu0 %v200
    %v307 = vpop.f32.mrf.mxu0
    %v308 = vadd.f32 %v170, %v307
    %v309 = vpop.f32.mrf.mxu0
    %310 = vdwg.mxu0
    %v311 = vld [vmem:[%s2] sm:$0xff]
    %v312 = vld [vmem:[%s2 + $0x8] sm:$0xff]
    %v313 = vld [vmem:[%s2 + $0x10] sm:$0xff]
    %v314 = vld [vmem:[%s2 + $0x18] sm:$0xff]
    %v315 = vld [vmem:[%s2 + $0x20] sm:$0xff]
    %v316 = vld [vmem:[%s2 + $0x28] sm:$0xff]
    %v317 = vld [vmem:[%s2 + $0x30] sm:$0xff]
    %v318 = vld [vmem:[%s2 + $0x38] sm:$0xff]
    %v319 = vadd.f32 %v273, %v311
    %v320 = vadd.f32 %v278, %v312
    %v321 = vadd.f32 %v283, %v313
    %v322 = vadd.f32 %v288, %v314
    %v323 = vadd.f32 %v293, %v315
    %v324 = vadd.f32 %v298, %v316
    %v325 = vadd.f32 %v303, %v317
    %v326 = vadd.f32 %v308, %v318
    %vm327 = vcmask 130048
    %v328 = vsel %vm327, %v319, -inf
    %329 = vmax.xlane.f32.xlu0 %v328
    %v330 = vpop.xlane.xlu0 %329
    %v331 = vsel %vm327, %v320, -inf
    %332 = vmax.xlane.f32.xlu0 %v331
    %v333 = vpop.xlane.xlu0 %332
    %v334 = vsel %vm327, %v321, -inf
    %335 = vmax.xlane.f32.xlu0 %v334
    %v336 = vpop.xlane.xlu0 %335
    %v337 = vsel %vm327, %v322, -inf
    %338 = vmax.xlane.f32.xlu0 %v337
    %v339 = vpop.xlane.xlu0 %338
    %v340 = vsel %vm327, %v323, -inf
    %341 = vmax.xlane.f32.xlu0 %v340
    %v342 = vpop.xlane.xlu0 %341
    %v343 = vsel %vm327, %v324, -inf
    %344 = vmax.xlane.f32.xlu0 %v343
    %v345 = vpop.xlane.xlu0 %344
    %v346 = vsel %vm327, %v325, -inf
    %347 = vmax.xlane.f32.xlu0 %v346
    %v348 = vpop.xlane.xlu0 %347
    %v349 = vsel %vm327, %v326, -inf
    %350 = vmax.xlane.f32.xlu0 %v349
    %v351 = vpop.xlane.xlu0 %350
    %v352 = vsub.f32 %v319, %v330
    %v353 = vsub.f32 %v320, %v333
    %v354 = vsub.f32 %v321, %v336
    %v355 = vsub.f32 %v322, %v339
    %v356 = vsub.f32 %v323, %v342
    %v357 = vsub.f32 %v324, %v345
    %v358 = vsub.f32 %v325, %v348
    %v359 = vsub.f32 %v326, %v351
    %v360 = vmul.f32 %v352, 1.442695
    %v361 = vpow.pop %v360
    %v362 = vmul.f32 %v353, 1.442695
    %v363 = vpow.pop %v362
    %v364 = vmul.f32 %v354, 1.442695
    %v365 = vpow.pop %v364
    %v366 = vmul.f32 %v355, 1.442695
    %v367 = vpow.pop %v366
    %v368 = vmul.f32 %v356, 1.442695
    %v369 = vpow.pop %v368
    %v370 = vmul.f32 %v357, 1.442695
    %v371 = vpow.pop %v370
    %v372 = vmul.f32 %v358, 1.442695
    %v373 = vpow.pop %v372
    %v374 = vmul.f32 %v359, 1.442695
    %v375 = vpow.pop %v374
    %v376 = vsel %vm327, %v361, 0.0
    %377 = vadd.xlane.f32.xlu0 %v376
    %v378 = vpop.xlane.xlu0 %377
    %v379 = vsel %vm327, %v363, 0.0
    %380 = vadd.xlane.f32.xlu0 %v379
    %v381 = vpop.xlane.xlu0 %380
    %v382 = vsel %vm327, %v365, 0.0
    %383 = vadd.xlane.f32.xlu0 %v382
    %v384 = vpop.xlane.xlu0 %383
    %v385 = vsel %vm327, %v367, 0.0
    %386 = vadd.xlane.f32.xlu0 %v385
    %v387 = vpop.xlane.xlu0 %386
    %v388 = vsel %vm327, %v369, 0.0
    %389 = vadd.xlane.f32.xlu0 %v388
    %v390 = vpop.xlane.xlu0 %389
    %v391 = vsel %vm327, %v371, 0.0
    %392 = vadd.xlane.f32.xlu0 %v391
    %v393 = vpop.xlane.xlu0 %392
    %v394 = vsel %vm327, %v373, 0.0
    %395 = vadd.xlane.f32.xlu0 %v394
    %v396 = vpop.xlane.xlu0 %395
    %v397 = vsel %vm327, %v375, 0.0
    %398 = vadd.xlane.f32.xlu0 %v397
    %v399 = vpop.xlane.xlu0 %398
    %v400 = vrcp.pop %v378
    %v401 = vmul.f32 %v361, %v400
    %v402 = vrcp.pop %v381
    %v403 = vmul.f32 %v363, %v402
    %v404 = vrcp.pop %v384
    %v405 = vmul.f32 %v365, %v404
    %v406 = vrcp.pop %v387
    %v407 = vmul.f32 %v367, %v406
    %v408 = vrcp.pop %v390
    %v409 = vmul.f32 %v369, %v408
    %v410 = vrcp.pop %v393
    %v411 = vmul.f32 %v371, %v410
    %v412 = vrcp.pop %v396
    %v413 = vmul.f32 %v373, %v412
    %v414 = vrcp.pop %v399
    %v415 = vmul.f32 %v375, %v414
    %416 = vrot.lane.b32.xlu0 %v141, 64
    %v417 = vpop.permute.xlu0 %416
    %418 = vrot.lane.b32.xlu0 %v146, 64
    %v419 = vpop.permute.xlu0 %418
    %v423 = vsel %vm327, %v401, 0
    %v426 = vsel %vm327, %v403, 0
    %v429 = vsel %vm327, %v405, 0
    %v432 = vsel %vm327, %v407, 0
    %v435 = vsel %vm327, %v409, 0
    %v438 = vsel %vm327, %v411, 0
    %v441 = vsel %vm327, %v413, 0
    %v444 = vsel %vm327, %v415, 0
    %446 = vmatprep.subr.mxu0 0.0
    %447 = vmatpush1.msra.mxu0 0.0
    %448 = vmatprep.subr.mxu0 0.0
    %449 = vmatpush1.msra.mxu0 0.0
    %450 = vmatprep.subr.mxu0 0.0
    %451 = vmatpush1.msra.mxu0 0.0
    %452 = vmatprep.subr.mxu0 0.0
    %453 = vmatpush1.msra.mxu0 0.0
    %454 = vmatprep.subr.mxu0 0.0
    %455 = vmatpush1.msra.mxu0 0.0
    %456 = vmatprep.subr.mxu0 0.0
    %457 = vmatpush1.msra.mxu0 0.0
    %458 = vmatprep.subr.mxu0 0.0
    %459 = vmatpush1.msra.mxu0 0.0
    %460 = vmatprep.subr.mxu0 0.0
    %461 = vmatpush1.msra.mxu0 0.0
    %462 = vmatprep.subr.mxu0 0.0
    %463 = vmatpush1.msra.mxu0 0.0
    %464 = vmatprep.subr.mxu0 0.0
    %465 = vmatpush1.msra.mxu0 0.0
    %466 = vmatprep.subr.mxu0 0.0
    %467 = vmatpush1.msra.mxu0 0.0
    %468 = vmatprep.subr.mxu0 0.0
    %469 = vmatpush1.msra.mxu0 0.0
    %470 = vmatprep.subr.mxu0 0.0
    %471 = vmatpush1.msra.mxu0 0.0
    %472 = vmatprep.subr.mxu0 0.0
    %473 = vmatpush1.msra.mxu0 0.0
    %474 = vmatprep.subr.mxu0 0.0
    %475 = vmatpush1.msra.mxu0 %v419
    %476 = vmatprep.subr.mxu0 0.0
    %477 = vmatpush1.msra.mxu0 %v417
    %478 = vmatprep.subr.mxu0 0.0
    %479 = vmatpush2.msra.mxu0 0.0
    %480 = vmatprep.subr.mxu0 0.0
    %481 = vmatpush2.msra.mxu0 0.0
    %482 = vmatprep.subr.mxu0 0.0
    %483 = vmatpush2.msra.mxu0 0.0
    %484 = vmatprep.subr.mxu0 0.0
    %485 = vmatpush2.msra.mxu0 0.0
    %486 = vmatprep.subr.mxu0 0.0
    %487 = vmatpush2.msra.mxu0 0.0
    %488 = vmatprep.subr.mxu0 0.0
    %489 = vmatpush2.msra.mxu0 0.0
    %490 = vmatprep.subr.mxu0 0.0
    %491 = vmatpush2.msra.mxu0 0.0
    %492 = vmatprep.subr.mxu0 0.0
    %493 = vmatpush2.msra.mxu0 0.0
    %494 = vmatprep.subr.mxu0 0.0
    %495 = vmatpush2.msra.mxu0 0.0
    %496 = vmatprep.subr.mxu0 0.0
    %497 = vmatpush2.msra.mxu0 0.0
    %498 = vmatprep.subr.mxu0 0.0
    %499 = vmatpush2.msra.mxu0 0.0
    %500 = vmatprep.subr.mxu0 0.0
    %501 = vmatpush2.msra.mxu0 0.0
    %502 = vmatprep.subr.mxu0 0.0
    %503 = vmatpush2.msra.mxu0 0.0
    %504 = vmatprep.subr.mxu0 0.0
    %505 = vmatpush2.msra.mxu0 0.0
    %506 = vmatprep.subr.mxu0 0.0
    %507 = vmatpush2.msra.mxu0 0.0
    %508 = vmatprep.subr.mxu0 0.0
    %509 = vmatpush2.msra.mxu0 0.0
    %510 = vmatprep.mubr.f32.mxu0 0.0
    %511 = vmatmul.mubr.f32.gmra.mxu0 %v423
    %v512 = vpop.f32.mrf.mxu0
    %v513 = vadd.f32 0.0, %v512
    %v514 = vpop.f32.mrf.mxu0
    %515 = vmatprep.mubr.f32.mxu0 0.0
    %516 = vmatmul.mubr.f32.gmra.mxu0 %v426
    %v517 = vpop.f32.mrf.mxu0
    %v518 = vadd.f32 0.0, %v517
    %v519 = vpop.f32.mrf.mxu0
    %520 = vmatprep.mubr.f32.mxu0 0.0
    %521 = vmatmul.mubr.f32.gmra.mxu0 %v429
    %v522 = vpop.f32.mrf.mxu0
    %v523 = vadd.f32 0.0, %v522
    %v524 = vpop.f32.mrf.mxu0
    %525 = vmatprep.mubr.f32.mxu0 0.0
    %526 = vmatmul.mubr.f32.gmra.mxu0 %v432
    %v527 = vpop.f32.mrf.mxu0
    %v528 = vadd.f32 0.0, %v527
    %v529 = vpop.f32.mrf.mxu0
    %530 = vmatprep.mubr.f32.mxu0 0.0
    %531 = vmatmul.mubr.f32.gmra.mxu0 %v435
    %v532 = vpop.f32.mrf.mxu0
    %v533 = vadd.f32 0.0, %v532
    %v534 = vpop.f32.mrf.mxu0
    %535 = vmatprep.mubr.f32.mxu0 0.0
    %536 = vmatmul.mubr.f32.gmra.mxu0 %v438
    %v537 = vpop.f32.mrf.mxu0
    %v538 = vadd.f32 0.0, %v537
    %v539 = vpop.f32.mrf.mxu0
    %540 = vmatprep.mubr.f32.mxu0 0.0
    %541 = vmatmul.mubr.f32.gmra.mxu0 %v441
    %v542 = vpop.f32.mrf.mxu0
    %v543 = vadd.f32 0.0, %v542
    %v544 = vpop.f32.mrf.mxu0
    %545 = vmatprep.mubr.f32.mxu0 0.0
    %546 = vmatmul.mubr.f32.gmra.mxu0 %v444
    %v547 = vpop.f32.mrf.mxu0
    %v548 = vadd.f32 0.0, %v547
    %v549 = vpop.f32.mrf.mxu0
    %550 = vdwg.mxu0
    %v551 = vmul.f32 %v513, %v149
    %v552 = vmul.f32 %v518, %v150
    %v553 = vmul.f32 %v523, %v151
    %v554 = vmul.f32 %v528, %v152
    %v555 = vmul.f32 %v533, %v153
    %v556 = vmul.f32 %v538, %v154
    %v557 = vmul.f32 %v543, %v155
    %v558 = vmul.f32 %v548, %v156
    %v559 = vadd.f32 %v551, %v552
    %v560 = vadd.f32 %v559, %v553
    %v561 = vadd.f32 %v560, %v554
    %v562 = vadd.f32 %v555, %v556
    %v563 = vadd.f32 %v562, %v557
    %v564 = vadd.f32 %v563, %v558
    %v565 = vld [vmem:[%s6] sm:$0xff]
    %v566 = vld [vmem:[%s6 + $0x8] sm:$0xff]
    %v567 = vld [vmem:[%s6 + $0x10] sm:$0xff]
    %v568 = vld [vmem:[%s6 + $0x18] sm:$0xff]
    %v569 = vld [vmem:[%s7] sm:$0x1]
    %v571 = vlaneseq
    %v572 = vshrl.u32 %v571, 7
    %v573 = vsub.s32 0, %v572
    %v574 = vrot.slane %v569, %v573
    %v577 = vsel %vm67, %v561, 0
    %v580 = vsel %vm67, %v564, 0
    %582 = vmatprep.subr.mxu0 0.0
    %583 = vmatpush1.msra.mxu0 0.0
    %584 = vmatprep.subr.mxu0 0.0
    %585 = vmatpush1.msra.mxu0 0.0
    %586 = vmatprep.subr.mxu0 0.0
    %587 = vmatpush1.msra.mxu0 0.0
    %588 = vmatprep.subr.mxu0 0.0
    %589 = vmatpush1.msra.mxu0 0.0
    %590 = vmatprep.subr.mxu0 0.0
    %591 = vmatpush1.msra.mxu0 0.0
    %592 = vmatprep.subr.mxu0 0.0
    %593 = vmatpush1.msra.mxu0 0.0
    %594 = vmatprep.subr.mxu0 0.0
    %595 = vmatpush1.msra.mxu0 0.0
    %596 = vmatprep.subr.mxu0 0.0
    %597 = vmatpush1.msra.mxu0 0.0
    %598 = vmatprep.subr.mxu0 0.0
    %599 = vmatpush1.msra.mxu0 0.0
    %600 = vmatprep.subr.mxu0 0.0
    %601 = vmatpush1.msra.mxu0 0.0
    %602 = vmatprep.subr.mxu0 0.0
    %603 = vmatpush1.msra.mxu0 0.0
    %604 = vmatprep.subr.mxu0 0.0
    %605 = vmatpush1.msra.mxu0 0.0
    %606 = vmatprep.subr.mxu0 0.0
    %607 = vmatpush1.msra.mxu0 %v568
    %608 = vmatprep.subr.mxu0 0.0
    %609 = vmatpush1.msra.mxu0 %v567
    %610 = vmatprep.subr.mxu0 0.0
    %611 = vmatpush1.msra.mxu0 %v566
    %612 = vmatprep.subr.mxu0 0.0
    %613 = vmatpush1.msra.mxu0 %v565
    %614 = vmatprep.subr.mxu0 0.0
    %615 = vmatpush2.msra.mxu0 0.0
    %616 = vmatprep.subr.mxu0 0.0
    %617 = vmatpush2.msra.mxu0 0.0
    %618 = vmatprep.subr.mxu0 0.0
    %619 = vmatpush2.msra.mxu0 0.0
    %620 = vmatprep.subr.mxu0 0.0
    %621 = vmatpush2.msra.mxu0 0.0
    %622 = vmatprep.subr.mxu0 0.0
    %623 = vmatpush2.msra.mxu0 0.0
    %624 = vmatprep.subr.mxu0 0.0
    %625 = vmatpush2.msra.mxu0 0.0
    %626 = vmatprep.subr.mxu0 0.0
    %627 = vmatpush2.msra.mxu0 0.0
    %628 = vmatprep.subr.mxu0 0.0
    %629 = vmatpush2.msra.mxu0 0.0
    %630 = vmatprep.subr.mxu0 0.0
    %631 = vmatpush2.msra.mxu0 0.0
    %632 = vmatprep.subr.mxu0 0.0
    %633 = vmatpush2.msra.mxu0 0.0
    %634 = vmatprep.subr.mxu0 0.0
    %635 = vmatpush2.msra.mxu0 0.0
    %636 = vmatprep.subr.mxu0 0.0
    %637 = vmatpush2.msra.mxu0 0.0
    %638 = vmatprep.subr.mxu0 0.0
    %639 = vmatpush2.msra.mxu0 0.0
    %640 = vmatprep.subr.mxu0 0.0
    %641 = vmatpush2.msra.mxu0 0.0
    %642 = vmatprep.subr.mxu0 0.0
    %643 = vmatpush2.msra.mxu0 0.0
    %644 = vmatprep.subr.mxu0 0.0
    %645 = vmatpush2.msra.mxu0 0.0
    %646 = vmatprep.mubr.f32.mxu0 0.0
    %647 = vmatmul.mubr.f32.gmra.mxu0 %v577
    %v648 = vpop.f32.mrf.mxu0
    %v649 = vadd.f32 %v574, %v648
    %v650 = vpop.f32.mrf.mxu0
    %651 = vmatprep.mubr.f32.mxu0 0.0
    %652 = vmatmul.mubr.f32.gmra.mxu0 %v580
    %v653 = vpop.f32.mrf.mxu0
    %v654 = vadd.f32 %v574, %v653
    %v655 = vpop.f32.mrf.mxu0
    %656 = vdwg.mxu0
    %v657 = vadd.f32 %v649, %v54
    %v658 = vadd.f32 %v654, %v55
    %v659 = vld [vmem:[%s8] sm:$0x1]
    %v660 = vld [vmem:[%s9] sm:$0x1]
    %v661 = vsel %vm67, %v657, 0.0
    %662 = vadd.xlane.f32.xlu0 %v661
    %v663 = vpop.xlane.xlu0 %662
    %v664 = vsel %vm67, %v658, 0.0
    %665 = vadd.xlane.f32.xlu0 %v664
    %v666 = vpop.xlane.xlu0 %665
    %v667 = vrcp.pop 32.0
    %v668 = vmul.f32 %v663, %v667
    %v669 = vmul.f32 %v666, %v667
    %v670 = vsub.f32 %v657, %v668
    %v671 = vsub.f32 %v658, %v669
    %v672 = vmul.f32 %v670, %v670
    %v673 = vmul.f32 %v671, %v671
    %v674 = vsel %vm67, %v672, 0.0
    %675 = vadd.xlane.f32.xlu0 %v674
    %v676 = vpop.xlane.xlu0 %675
    %v677 = vsel %vm67, %v673, 0.0
    %678 = vadd.xlane.f32.xlu0 %v677
    %v679 = vpop.xlane.xlu0 %678
    %v680 = vmul.f32 %v676, %v667
    %v681 = vmul.f32 %v679, %v667
    %v682 = vadd.f32 %v680, 1e-12
    %v683 = vadd.f32 %v681, 1e-12
    %v684 = vrsqrt.pop %v682
    %v685 = vmul.f32 %v682, %v684
    %vm686 = vcmp.eq.f32.partialorder %v682, inf
    %v687 = vsel %vm686, %v682, %v685
    %vm688 = vcmp.eq.f32.partialorder %v682, 0.0
    %v689 = vand.u32 %v682, 2147483648
    %v690 = vsel %vm688, %v689, %v687
    %v691 = vrsqrt.pop %v683
    %v692 = vmul.f32 %v683, %v691
    %vm693 = vcmp.eq.f32.partialorder %v683, inf
    %v694 = vsel %vm693, %v683, %v692
    %vm695 = vcmp.eq.f32.partialorder %v683, 0.0
    %v696 = vand.u32 %v683, 2147483648
    %v697 = vsel %vm695, %v696, %v694
    %v698 = vrcp.pop %v690
    %v699 = vmul.f32 %v670, %v698
    %v700 = vrcp.pop %v697
    %v701 = vmul.f32 %v671, %v700
    %v703 = vlaneseq
    %v704 = vshrl.u32 %v703, 7
    %v705 = vsub.s32 0, %v704
    %v706 = vrot.slane %v659, %v705
    %v708 = vmul.f32 %v706, %v699
    %v709 = vmul.f32 %v706, %v701
    %v711 = vlaneseq
    %v712 = vshrl.u32 %v711, 7
    %v713 = vsub.s32 0, %v712
    %v714 = vrot.slane %v660, %v713
    %v716 = vadd.f32 %v708, %v714
    %v717 = vadd.f32 %v709, %v714
    %v718 = vld [vmem:[%s10] sm:$0xff]
    %v719 = vld [vmem:[%s10 + $0x8] sm:$0xff]
    %v720 = vld [vmem:[%s10 + $0x10] sm:$0xff]
    %v721 = vld [vmem:[%s10 + $0x18] sm:$0xff]
    %v722 = vld [vmem:[%s11] sm:$0x1]
    %v724 = vlaneseq
    %v725 = vshrl.u32 %v724, 7
    %v726 = vsub.s32 0, %v725
    %v727 = vrot.slane %v722, %v726
    %v730 = vsel %vm67, %v716, 0
    %v733 = vsel %vm67, %v717, 0
    %735 = vmatprep.subr.mxu0 0.0
    %736 = vmatpush1.msra.mxu0 0.0
    %737 = vmatprep.subr.mxu0 0.0
    %738 = vmatpush1.msra.mxu0 0.0
    %739 = vmatprep.subr.mxu0 0.0
    %740 = vmatpush1.msra.mxu0 0.0
    %741 = vmatprep.subr.mxu0 0.0
    %742 = vmatpush1.msra.mxu0 0.0
    %743 = vmatprep.subr.mxu0 0.0
    %744 = vmatpush1.msra.mxu0 0.0
    %745 = vmatprep.subr.mxu0 0.0
    %746 = vmatpush1.msra.mxu0 0.0
    %747 = vmatprep.subr.mxu0 0.0
    %748 = vmatpush1.msra.mxu0 0.0
    %749 = vmatprep.subr.mxu0 0.0
    %750 = vmatpush1.msra.mxu0 0.0
    %751 = vmatprep.subr.mxu0 0.0
    %752 = vmatpush1.msra.mxu0 0.0
    %753 = vmatprep.subr.mxu0 0.0
    %754 = vmatpush1.msra.mxu0 0.0
    %755 = vmatprep.subr.mxu0 0.0
    %756 = vmatpush1.msra.mxu0 0.0
    %757 = vmatprep.subr.mxu0 0.0
    %758 = vmatpush1.msra.mxu0 0.0
    %759 = vmatprep.subr.mxu0 0.0
    %760 = vmatpush1.msra.mxu0 %v721
    %761 = vmatprep.subr.mxu0 0.0
    %762 = vmatpush1.msra.mxu0 %v720
    %763 = vmatprep.subr.mxu0 0.0
    %764 = vmatpush1.msra.mxu0 %v719
    %765 = vmatprep.subr.mxu0 0.0
    %766 = vmatpush1.msra.mxu0 %v718
    %767 = vmatprep.subr.mxu0 0.0
    %768 = vmatpush2.msra.mxu0 0.0
    %769 = vmatprep.subr.mxu0 0.0
    %770 = vmatpush2.msra.mxu0 0.0
    %771 = vmatprep.subr.mxu0 0.0
    %772 = vmatpush2.msra.mxu0 0.0
    %773 = vmatprep.subr.mxu0 0.0
    %774 = vmatpush2.msra.mxu0 0.0
    %775 = vmatprep.subr.mxu0 0.0
    %776 = vmatpush2.msra.mxu0 0.0
    %777 = vmatprep.subr.mxu0 0.0
    %778 = vmatpush2.msra.mxu0 0.0
    %779 = vmatprep.subr.mxu0 0.0
    %780 = vmatpush2.msra.mxu0 0.0
    %781 = vmatprep.subr.mxu0 0.0
    %782 = vmatpush2.msra.mxu0 0.0
    %783 = vmatprep.subr.mxu0 0.0
    %784 = vmatpush2.msra.mxu0 0.0
    %785 = vmatprep.subr.mxu0 0.0
    %786 = vmatpush2.msra.mxu0 0.0
    %787 = vmatprep.subr.mxu0 0.0
    %788 = vmatpush2.msra.mxu0 0.0
    %789 = vmatprep.subr.mxu0 0.0
    %790 = vmatpush2.msra.mxu0 0.0
    %791 = vmatprep.subr.mxu0 0.0
    %792 = vmatpush2.msra.mxu0 0.0
    %793 = vmatprep.subr.mxu0 0.0
    %794 = vmatpush2.msra.mxu0 0.0
    %795 = vmatprep.subr.mxu0 0.0
    %796 = vmatpush2.msra.mxu0 0.0
    %797 = vmatprep.subr.mxu0 0.0
    %798 = vmatpush2.msra.mxu0 0.0
    %799 = vmatprep.mubr.f32.mxu0 0.0
    %800 = vmatmul.mubr.f32.gmra.mxu0 %v730
    %v801 = vpop.f32.mrf.mxu0
    %v802 = vadd.f32 %v727, %v801
    %v803 = vpop.f32.mrf.mxu0
    %804 = vmatprep.mubr.f32.mxu0 0.0
    %805 = vmatmul.mubr.f32.gmra.mxu0 %v733
    %v806 = vpop.f32.mrf.mxu0
    %v807 = vadd.f32 %v727, %v806
    %v808 = vpop.f32.mrf.mxu0
    %809 = vdwg.mxu0
    %v810 = vmul.f32 %v802, 0.5
    %v811 = vmul.f32 %v807, 0.5
    %v812 = vrcp.pop 1.4142135
    %v813 = vmul.f32 %v802, %v812
    %v814 = vmul.f32 %v807, %v812
    %v815 = verf.f32.pop %v813
    %v816 = verf.f32.pop %v814
    %v817 = vadd.f32 %v815, 1.0
    %v818 = vadd.f32 %v816, 1.0
    %v819 = vmul.f32 %v810, %v817
    %v820 = vmul.f32 %v811, %v818
    %v821 = vld [vmem:[%s12] sm:$0xff]
    %v822 = vld [vmem:[%s12 + $0x8] sm:$0xff]
    %v823 = vld [vmem:[%s12 + $0x10] sm:$0xff]
    %v824 = vld [vmem:[%s12 + $0x18] sm:$0xff]
    %v825 = vld [vmem:[%s12 + $0x20] sm:$0xff]
    %v826 = vld [vmem:[%s12 + $0x28] sm:$0xff]
    %v827 = vld [vmem:[%s12 + $0x30] sm:$0xff]
    %v828 = vld [vmem:[%s12 + $0x38] sm:$0xff]
    %v829 = vld [vmem:[%s13] sm:$0x1]
    %v831 = vlaneseq
    %v832 = vshrl.u32 %v831, 7
    %v833 = vsub.s32 0, %v832
    %v834 = vrot.slane %v829, %v833
    %vm836 = vcmask 523264
    %v838 = vsel %vm836, %v819, 0
    %v841 = vsel %vm836, %v820, 0
    %843 = vmatprep.subr.mxu0 0.0
    %844 = vmatpush1.msra.mxu0 0.0
    %845 = vmatprep.subr.mxu0 0.0
    %846 = vmatpush1.msra.mxu0 0.0
    %847 = vmatprep.subr.mxu0 0.0
    %848 = vmatpush1.msra.mxu0 0.0
    %849 = vmatprep.subr.mxu0 0.0
    %850 = vmatpush1.msra.mxu0 0.0
    %851 = vmatprep.subr.mxu0 0.0
    %852 = vmatpush1.msra.mxu0 0.0
    %853 = vmatprep.subr.mxu0 0.0
    %854 = vmatpush1.msra.mxu0 0.0
    %855 = vmatprep.subr.mxu0 0.0
    %856 = vmatpush1.msra.mxu0 0.0
    %857 = vmatprep.subr.mxu0 0.0
    %858 = vmatpush1.msra.mxu0 0.0
    %859 = vmatprep.subr.mxu0 0.0
    %860 = vmatpush1.msra.mxu0 %v828
    %861 = vmatprep.subr.mxu0 0.0
    %862 = vmatpush1.msra.mxu0 %v827
    %863 = vmatprep.subr.mxu0 0.0
    %864 = vmatpush1.msra.mxu0 %v826
    %865 = vmatprep.subr.mxu0 0.0
    %866 = vmatpush1.msra.mxu0 %v825
    %867 = vmatprep.subr.mxu0 0.0
    %868 = vmatpush1.msra.mxu0 %v824
    %869 = vmatprep.subr.mxu0 0.0
    %870 = vmatpush1.msra.mxu0 %v823
    %871 = vmatprep.subr.mxu0 0.0
    %872 = vmatpush1.msra.mxu0 %v822
    %873 = vmatprep.subr.mxu0 0.0
    %874 = vmatpush1.msra.mxu0 %v821
    %875 = vmatprep.subr.mxu0 0.0
    %876 = vmatpush2.msra.mxu0 0.0
    %877 = vmatprep.subr.mxu0 0.0
    %878 = vmatpush2.msra.mxu0 0.0
    %879 = vmatprep.subr.mxu0 0.0
    %880 = vmatpush2.msra.mxu0 0.0
    %881 = vmatprep.subr.mxu0 0.0
    %882 = vmatpush2.msra.mxu0 0.0
    %883 = vmatprep.subr.mxu0 0.0
    %884 = vmatpush2.msra.mxu0 0.0
    %885 = vmatprep.subr.mxu0 0.0
    %886 = vmatpush2.msra.mxu0 0.0
    %887 = vmatprep.subr.mxu0 0.0
    %888 = vmatpush2.msra.mxu0 0.0
    %889 = vmatprep.subr.mxu0 0.0
    %890 = vmatpush2.msra.mxu0 0.0
    %891 = vmatprep.subr.mxu0 0.0
    %892 = vmatpush2.msra.mxu0 0.0
    %893 = vmatprep.subr.mxu0 0.0
    %894 = vmatpush2.msra.mxu0 0.0
    %895 = vmatprep.subr.mxu0 0.0
    %896 = vmatpush2.msra.mxu0 0.0
    %897 = vmatprep.subr.mxu0 0.0
    %898 = vmatpush2.msra.mxu0 0.0
    %899 = vmatprep.subr.mxu0 0.0
    %900 = vmatpush2.msra.mxu0 0.0
    %901 = vmatprep.subr.mxu0 0.0
    %902 = vmatpush2.msra.mxu0 0.0
    %903 = vmatprep.subr.mxu0 0.0
    %904 = vmatpush2.msra.mxu0 0.0
    %905 = vmatprep.subr.mxu0 0.0
    %906 = vmatpush2.msra.mxu0 0.0
    %907 = vmatprep.mubr.f32.mxu0 0.0
    %908 = vmatmul.mubr.f32.gmra.mxu0 %v838
    %v909 = vpop.f32.mrf.mxu0
    %v910 = vadd.f32 %v834, %v909
    %v911 = vpop.f32.mrf.mxu0
    %912 = vmatprep.mubr.f32.mxu0 0.0
    %913 = vmatmul.mubr.f32.gmra.mxu0 %v841
    %v914 = vpop.f32.mrf.mxu0
    %v915 = vadd.f32 %v834, %v914
    %v916 = vpop.f32.mrf.mxu0
    %917 = vdwg.mxu0
    %v918 = vadd.f32 %v910, %v716
    %v919 = vadd.f32 %v915, %v717
    %v920 = vld [vmem:[%s14] sm:$0x1]
    %v921 = vld [vmem:[%s15] sm:$0x1]
    %v922 = vsel %vm67, %v918, 0.0
    %923 = vadd.xlane.f32.xlu0 %v922
    %v924 = vpop.xlane.xlu0 %923
    %v925 = vsel %vm67, %v919, 0.0
    %926 = vadd.xlane.f32.xlu0 %v925
    %v927 = vpop.xlane.xlu0 %926
    %v928 = vmul.f32 %v924, %v667
    %v929 = vmul.f32 %v927, %v667
    %v930 = vsub.f32 %v918, %v928
    %v931 = vsub.f32 %v919, %v929
    %v932 = vmul.f32 %v930, %v930
    %v933 = vmul.f32 %v931, %v931
    %v934 = vsel %vm67, %v932, 0.0
    %935 = vadd.xlane.f32.xlu0 %v934
    %v936 = vpop.xlane.xlu0 %935
    %v937 = vsel %vm67, %v933, 0.0
    %938 = vadd.xlane.f32.xlu0 %v937
    %v939 = vpop.xlane.xlu0 %938
    %v940 = vmul.f32 %v936, %v667
    %v941 = vmul.f32 %v939, %v667
    %v942 = vadd.f32 %v940, 1e-12
    %v943 = vadd.f32 %v941, 1e-12
    %v944 = vrsqrt.pop %v942
    %v945 = vmul.f32 %v942, %v944
    %vm946 = vcmp.eq.f32.partialorder %v942, inf
    %v947 = vsel %vm946, %v942, %v945
    %vm948 = vcmp.eq.f32.partialorder %v942, 0.0
    %v949 = vand.u32 %v942, 2147483648
    %v950 = vsel %vm948, %v949, %v947
    %v951 = vrsqrt.pop %v943
    %v952 = vmul.f32 %v943, %v951
    %vm953 = vcmp.eq.f32.partialorder %v943, inf
    %v954 = vsel %vm953, %v943, %v952
    %vm955 = vcmp.eq.f32.partialorder %v943, 0.0
    %v956 = vand.u32 %v943, 2147483648
    %v957 = vsel %vm955, %v956, %v954
    %v958 = vrcp.pop %v950
    %v959 = vmul.f32 %v930, %v958
    %v960 = vrcp.pop %v957
    %v961 = vmul.f32 %v931, %v960
    %v963 = vlaneseq
    %v964 = vshrl.u32 %v963, 7
    %v965 = vsub.s32 0, %v964
    %v966 = vrot.slane %v920, %v965
    %v968 = vmul.f32 %v966, %v959
    %v969 = vmul.f32 %v966, %v961
    %v971 = vlaneseq
    %v972 = vshrl.u32 %v971, 7
    %v973 = vsub.s32 0, %v972
    %v974 = vrot.slane %v921, %v973
    %v976 = vadd.f32 %v968, %v974
    %v977 = vadd.f32 %v969, %v974
    %978 = vst.msk [vmem:[#allocation2] sm:$0xff] %vm67, %v976
    %979 = vst.msk [vmem:[#allocation2 + $0x8] sm:$0xff] %vm67, %v977
    // Predicated region
    $region66: #{tpu_custom_call.1} parent=1 // pred_check
      _
    $region67: #{tpu_custom_call.1} parent=1 // pred_check_branch
      %981 = sbr.rel (0) target = $region69
    $region68: #{tpu_custom_call.1} parent=1 // pred_region
      %s983 = ssub.s32 256, 256
      %984 = vsyncadd [#allocation3], %s983
      %s985 = sshll.u32 [#allocation2], 4
      %s986 = int_to_ptr.vmem [resolvable:$true] %s985
      %991 = dma.vmem_to_hbm [thread:$0]  %s986, 256, %s16, [#allocation3], 128, 128, 8
    $region69: #{tpu_custom_call.1} parent=1 // pred_fallthru
      _
    // Predicated region
    $region70: #{tpu_custom_call.1} parent=1 // pred_check
      _
    $region71: #{tpu_custom_call.1} parent=1 // pred_check_branch
      %993 = sbr.rel (0) target = $region73
    $region72: #{tpu_custom_call.1} parent=1 // pred_region
      %994 = dma.done [#allocation3], 256
    $region73: #{tpu_custom_call.1} parent=1 // pred_fallthru
      _
    %995 = vsyncpa [#allocation3], 1

</llo_original>
